<compile_context>
chip_gen: v5e
topology: v5e:2x2
jax: 0.10.0
libtpu: 0.0.40
codegen_flags: <defaults>
</compile_context>

<pallas_src>
import functools

import jax
import jax.numpy as jnp
from jax.experimental import pallas as pl
from jax.experimental.pallas import tpu as pltpu

LANES = 128
TILE_ROWS_MAX = 8192          # 8192 x 128 x 4 B = 4 MiB per f32 input tile
NUM_SPLITS = 2                # leading "parallel" axis (maps to both TCs on v7x)
VMEM_LIMIT_BYTES = 48 * 1024 * 1024


def _sublane_granule(dtype):
    """Packed sublane granule: f32/i32 -> 8, bf16/f16 -> 16, int8/fp8 -> 32."""
    itemsize = jnp.dtype(dtype).itemsize
    return 8 * max(1, 4 // int(itemsize))


def _round_up(x, m):
    return ((x + m - 1) // m) * m


def _sumsq_partial_kernel(yhat_ref, y_ref, out_ref, *, tile_rows, rows,
                          steps_per_split, granule, maybe_ragged):
    """Accumulates per-(sublane, lane) partial sums of (yhat - y)^2.

    out_ref is a (granule, 128) f32 block whose index map ignores the
    reduction axis, so it stays resident in VMEM and acts as the accumulator.
    """
    p = pl.program_id(0)          # parallel split axis
    j = pl.program_id(1)          # reduction ("arbitrary") axis

    @pl.when(j == 0)
    def _():
        out_ref[...] = jnp.zeros_like(out_ref)

    d = yhat_ref[...].astype(jnp.float32) - y_ref[...].astype(jnp.float32)

    def accumulate(dv):
        sq = dv * dv
        # Layout-preserving split of the leading dim + vreg-wise adds (VPU
        # only).  The single cross-lane reduce happens once, in the wrapper.
        out_ref[...] += jnp.sum(
            sq.reshape(tile_rows // granule, granule, LANES), axis=0)

    if not maybe_ragged:
        accumulate(d)
    else:
        # Global (unclamped) row-block index of this step.
        blk = p * steps_per_split + j
        needs_mask = (blk + 1) * tile_rows > rows

        @pl.when(jnp.logical_not(needs_mask))
        def _():
            # Steady state: no iota / compare / select on the hot path.
            accumulate(d)

        @pl.when(needs_mask)
        def _():
            # Last (partial) block of the row stream, or a clamped duplicate
            # block from an uneven split: mask rows beyond the real data
            # BEFORE squaring (garbage rows may hold anything).
            row0 = blk * tile_rows
            ridx = row0 + jax.lax.broadcasted_iota(
                jnp.int32, (tile_rows, LANES), 0)
            accumulate(jnp.where(ridx < rows, d, 0.0))


def rmse_loss(yhat, y, eps=1e-6, *, tile_rows_max=TILE_ROWS_MAX,
              num_splits=NUM_SPLITS):
    assert yhat.shape == y.shape, "RMSELoss expects matching shapes"
    n_elems = int(yhat.size)
    assert n_elems > 0

    flat_yhat = yhat.reshape(-1)      # bitcast for contiguous inputs
    flat_y = y.reshape(-1)

    rows = n_elems // LANES
    rem = n_elems - rows * LANES

    # Sub-128 tail: reduce it wrapper-side (reads <128 elements), instead of
    # padding / rewriting the whole arrays as before.
    tail_sumsq = jnp.float32(0.0)
    if rem:
        td = (flat_yhat[rows * LANES:].astype(jnp.float32)
              - flat_y[rows * LANES:].astype(jnp.float32))
        tail_sumsq = jnp.sum(td * td)

    if rows == 0:
        total = tail_sumsq
    else:
        if rem == 0:
            main_yhat, main_y = flat_yhat, flat_y        # zero-copy path
        else:
            # 128-aligned prefix only (never touches anything past n_elems).
            main_yhat = flat_yhat[: rows * LANES]
            main_y = flat_y[: rows * LANES]
        yhat2d = main_yhat.reshape(rows, LANES)
        y2d = main_y.reshape(rows, LANES)

        granule = max(_sublane_granule(yhat.dtype), _sublane_granule(y.dtype))
        tile_rows = _round_up(min(int(tile_rows_max), rows), granule)
        total_steps = pl.cdiv(rows, tile_rows)
        splits = max(1, min(int(num_splits), total_steps))
        steps_per_split = pl.cdiv(total_steps, splits)
        # Mask branch is only emitted when some block can be partial or
        # duplicated (uneven split); otherwise steady state is mask-free code.
        maybe_ragged = (rows % tile_rows != 0) or \
                       (steps_per_split * splits != total_steps)

        kernel = functools.partial(
            _sumsq_partial_kernel, tile_rows=tile_rows, rows=rows,
            steps_per_split=steps_per_split, granule=granule,
            maybe_ragged=maybe_ragged)

        def in_index_map(p, j):
            blk = p * steps_per_split + j
            # Clamp uneven-split overruns onto the last valid block; the
            # in-kernel mask zeroes their contribution.
            return (jnp.minimum(blk, total_steps - 1), 0)

        partials = pl.pallas_call(
            kernel,
            out_shape=jax.ShapeDtypeStruct((splits * granule, LANES),
                                           jnp.float32),
            grid_spec=pltpu.PrefetchScalarGridSpec(
                num_scalar_prefetch=0,
                grid=(splits, steps_per_split),
                in_specs=[
                    pl.BlockSpec((tile_rows, LANES), in_index_map),
                    pl.BlockSpec((tile_rows, LANES), in_index_map),
                ],
                out_specs=pl.BlockSpec((granule, LANES), lambda p, j: (p, 0)),
            ),
            compiler_params=pltpu.CompilerParams(
                dimension_semantics=("parallel", "arbitrary"),
                vmem_limit_bytes=VMEM_LIMIT_BYTES),
        )(yhat2d, y2d)

        total = jnp.sum(partials) + tail_sumsq

    inv_n = jnp.float32(1.0 / n_elems)     # exact in double, then cast
    return jnp.sqrt(total * inv_n + jnp.float32(eps))


if __name__ == "__main__":
    key = jax.random.PRNGKey(0)
    k1, k2, k3, k4, k5, k6 = jax.random.split(key, 6)

    def ref_rmse(a, b, eps=1e-6):
        a = a.astype(jnp.float32)
        b = b.astype(jnp.float32)
        return jnp.sqrt(jnp.mean((a - b) ** 2) + jnp.float32(eps))

    # Small NCHW-shaped predictions / targets, as the MSE-based loss implies.
    yhat = jax.random.normal(k1, (2, 4, 16, 16), dtype=jnp.float32)
    y = jax.random.normal(k2, (2, 4, 16, 16), dtype=jnp.float32)

    # 1) Aligned (2048 elems): fully zero-copy path.
    loss = rmse_loss(yhat, y, eps=1e-6)
    jax.block_until_ready(loss)
    assert jnp.allclose(loss, ref_rmse(yhat, y), rtol=1e-5, atol=1e-6)

    # 2) Two-way split path (rows=16, tile=8 -> grid (2, 1)).
    loss2 = rmse_loss(yhat, y, eps=1e-6, tile_rows_max=8)
    jax.block_until_ready(loss2)
    assert jnp.allclose(loss2, ref_rmse(yhat, y), rtol=1e-5, atol=1e-6)

    # 3) Uneven split: rows=24, tile=8 -> 3 blocks over 2 splits (clamped
    #    duplicate block gets fully masked).
    yh24 = jax.random.normal(k3, (3, 8, 128), dtype=jnp.float32)
    y24 = jax.random.normal(k4, (3, 8, 128), dtype=jnp.float32)
    loss3 = rmse_loss(yh24, y24, eps=1e-6, tile_rows_max=8)
    jax.block_until_ready(loss3)
    assert jnp.allclose(loss3, ref_rmse(yh24, y24), rtol=1e-5, atol=1e-6)

    # 4) Unaligned size (729 elems): wrapper tail + masked partial block.
    yh3 = jax.random.normal(k5, (3, 3, 9, 9), dtype=jnp.float32)
    y3 = jax.random.normal(k6, (3, 3, 9, 9), dtype=jnp.float32)
    loss4 = rmse_loss(yh3, y3, eps=1e-6)
    jax.block_until_ready(loss4)
    assert jnp.allclose(loss4, ref_rmse(yh3, y3), rtol=1e-5, atol=1e-6)

    # 5) bf16 inputs (dtype-aware 16-row granule, in-kernel f32 accumulate).
    yh_bf = yhat.astype(jnp.bfloat16)
    y_bf = y.astype(jnp.bfloat16)
    loss5 = rmse_loss(yh_bf, y_bf, eps=1e-6)
    jax.block_until_ready(loss5)
    assert jnp.allclose(loss5, ref_rmse(yh_bf, y_bf), rtol=1e-5, atol=1e-6)

    print("KERNEL_OK")
</pallas_src>

<mosaic_0001>
module attributes {stable_mosaic.version = 11 : i64} {
  func.func @_sumsq_partial_kernel(%arg0: i32, %arg1: i32, %arg2: memref<16x128xf32, #tpu.memory_space<vmem>>, %arg3: memref<16x128xf32, #tpu.memory_space<vmem>>, %arg4: memref<8x128xf32, #tpu.memory_space<vmem>>) attributes {dimension_semantics = [#tpu.dimension_semantics<parallel>, #tpu.dimension_semantics<arbitrary>], iteration_bounds = array<i64: 1, 1>, scalar_prefetch = 0 : i64, scratch_operands = 0 : i64, tpu.core_type = #tpu.core_type<tc>, window_params = [{transform_indices = @transform_0, window_bounds = array<i64: 16, 128>}, {transform_indices = @transform_1, window_bounds = array<i64: 16, 128>}, {transform_indices = @transform_2, window_bounds = array<i64: 8, 128>}]} {
    %c0_i32 = arith.constant 0 : i32
    %0 = arith.cmpi eq, %arg1, %c0_i32 : i32
    %1 = arith.extui %0 : i1 to i32
    %c0_i32_0 = arith.constant 0 : i32
    %2 = arith.cmpi ne, %1, %c0_i32_0 : i32
    scf.if %2 {
      %cst_8 = arith.constant 0.000000e+00 : f32
      %12 = vector.broadcast %cst_8 : f32 to vector<8x128xf32>
      %c0_9 = arith.constant 0 : index
      %c0_10 = arith.constant 0 : index
      %13 = vector.load %arg4[%c0_9, %c0_10] : memref<8x128xf32, #tpu.memory_space<vmem>>, vector<8x128xf32>
      tpu.vector_store %arg4[%c0_9, %c0_10], %12 {strides = array<i32>} : memref<8x128xf32, #tpu.memory_space<vmem>>, vector<8x128xf32>,
    } else {
    }
    %c0 = arith.constant 0 : index
    %c0_1 = arith.constant 0 : index
    %3 = vector.load %arg2[%c0, %c0_1] : memref<16x128xf32, #tpu.memory_space<vmem>>, vector<16x128xf32>
    %c0_2 = arith.constant 0 : index
    %c0_3 = arith.constant 0 : index
    %4 = vector.load %arg3[%c0_2, %c0_3] : memref<16x128xf32, #tpu.memory_space<vmem>>, vector<16x128xf32>
    %5 = arith.subf %3, %4 : vector<16x128xf32>
    %6 = arith.mulf %5, %5 : vector<16x128xf32>
    %c0_4 = arith.constant 0 : index
    %c0_5 = arith.constant 0 : index
    %7 = vector.load %arg4[%c0_4, %c0_5] : memref<8x128xf32, #tpu.memory_space<vmem>>, vector<8x128xf32>
    %8 = vector.shape_cast %6 : vector<16x128xf32> to vector<2x8x128xf32>
    %cst = arith.constant dense<0.000000e+00> : vector<8x128xf32>
    %9 = vector.multi_reduction <add>, %8, %cst [0] : vector<2x8x128xf32> to vector<8x128xf32>
    %10 = arith.addf %7, %9 : vector<8x128xf32>
    %c0_6 = arith.constant 0 : index
    %c0_7 = arith.constant 0 : index
    %11 = vector.load %arg4[%c0_6, %c0_7] : memref<8x128xf32, #tpu.memory_space<vmem>>, vector<8x128xf32>
    tpu.vector_store %arg4[%c0_6, %c0_7], %10 {strides = array<i32>} : memref<8x128xf32, #tpu.memory_space<vmem>>, vector<8x128xf32>,
    return
  }
  func.func @transform_0(%arg0: i32, %arg1: i32) -> (i32, i32) {
    %c1_i32 = arith.constant 1 : i32
    %0 = arith.muli %arg0, %c1_i32 : i32
    %1 = arith.addi %0, %arg1 : i32
    %c0_i32 = arith.constant 0 : i32
    %2 = arith.minsi %1, %c0_i32 : i32
    %c0_i32_0 = arith.constant 0 : i32
    %c0_i32_1 = arith.constant 0 : i32
    return %2, %c0_i32_0 : i32, i32
  }
  func.func @transform_1(%arg0: i32, %arg1: i32) -> (i32, i32) {
    %c1_i32 = arith.constant 1 : i32
    %0 = arith.muli %arg0, %c1_i32 : i32
    %1 = arith.addi %0, %arg1 : i32
    %c0_i32 = arith.constant 0 : i32
    %2 = arith.minsi %1, %c0_i32 : i32
    %c0_i32_0 = arith.constant 0 : i32
    %c0_i32_1 = arith.constant 0 : i32
    return %2, %c0_i32_0 : i32, i32
  }
  func.func @transform_2(%arg0: i32, %arg1: i32) -> (i32, i32) {
    %c0_i32 = arith.constant 0 : i32
    %c0_i32_0 = arith.constant 0 : i32
    return %arg0, %c0_i32 : i32, i32
  }
}

</mosaic_0001>

<llo_original>
// kernel: tpu_custom_call.1
$region0: #{tpu_custom_call.1}
  #allocation0 [shape = 'u32[]', space=smem, size = 0x4, offset = 0x4, fixed_abs, tag = 'smem constant byte address 0x4 - core index']
  #allocation1 [shape = 'u32[72,128]{1,0:T(1,128)}', space=vmem, size = 0x9000, scoped, tag = 'internal scratch']
  %s0 = inlined_call_operand.hbm [shape: f32[16,128], index: 0, kind: input, shape index: {}]
  %s1 = inlined_call_operand.hbm [shape: f32[16,128], index: 1, kind: input, shape index: {}]
  %s2 = inlined_call_operand.hbm [shape: f32[8,128], index: 2, kind: output, shape index: {}]
  %s3 = sld [smem:[#allocation0]]
  $region30: #{tpu_custom_call.1} parent=0
    _
  %s5 = ssub.s32 1, %s3
  %s6 = scalar_select 0, %s5, %s3
  $region1: #{tpu_custom_call.1} parent=0
    #allocation2 [shape = 'u8[8192]{0}', space=vmem, size = 0x2000, scoped, tag = 'input window, operand 0, single buffered']
    #allocation3 [shape = 's32[1]{0}', space=sflag, size = 0x4, scoped, tag = 'scoped memory for tpu_custom_call.1']
    #allocation4 [shape = 's32[1]{0}', space=sflag, size = 0x4, scoped, tag = 'scoped memory for tpu_custom_call.1']
    #allocation5 [shape = 'u8[8192]{0}', space=vmem, size = 0x2000, scoped, tag = 'input window, operand 1, single buffered']
    #allocation6 [shape = 's32[1]{0}', space=sflag, size = 0x4, scoped, tag = 'scoped memory for tpu_custom_call.1']
    #allocation7 [shape = 'u8[4096]{0}', space=vmem, size = 0x1000, scoped, tag = 'output window, operand 0, single buffered']
    %7 = vsyncpa [#allocation3], 0
    %8 = vsyncpa [#allocation6], 0
    %9 = vsyncpa [#allocation4], 0
    // Predicated region
    $region2: #{tpu_custom_call.1} parent=1 // pred_check
      _
    $region3: #{tpu_custom_call.1} parent=1 // pred_check_branch
      %11 = sbr.rel (0) target = $region5
    $region4: #{tpu_custom_call.1} parent=1 // pred_region
      %s12 = sadd.s32 0, 0
      %p13 = scmp.lt.s32.totalorder %s12, 0
      %s14 = scalar_select %p13, %s12, 0
      %s15 = smul.u32 2, %s14
      %17 = vsyncadd [#allocation3], 0
      %s18 = smul.addr %s15, 8
      %s19 = scalar_lea.hbm %s0, %s18
      %s20 = sshll.u32 %s19, 4
      %s21 = int_to_ptr.hbm [resolvable:$true] %s20
      %s22 = sshll.u32 [#allocation2], 4
      %s23 = int_to_ptr.vmem [resolvable:$true] %s22
      %28 = dma.hbm_to_vmem [thread:$0]  %s21, 256, %s23, [#allocation3], 128, 128, 8
    $region5: #{tpu_custom_call.1} parent=1 // pred_fallthru
      _
    // Predicated region
    $region6: #{tpu_custom_call.1} parent=1 // pred_check
      _
    $region7: #{tpu_custom_call.1} parent=1 // pred_check_branch
      %30 = sbr.rel (0) target = $region9
    $region8: #{tpu_custom_call.1} parent=1 // pred_region
      %s31 = sadd.s32 0, 0
      %p32 = scmp.lt.s32.totalorder %s31, 0
      %s33 = scalar_select %p32, %s31, 0
      %s34 = smul.u32 2, %s33
      %36 = vsyncadd [#allocation6], 0
      %s37 = smul.addr %s34, 8
      %s38 = scalar_lea.hbm %s1, %s37
      %s39 = sshll.u32 %s38, 4
      %s40 = int_to_ptr.hbm [resolvable:$true] %s39
      %s41 = sshll.u32 [#allocation5], 4
      %s42 = int_to_ptr.vmem [resolvable:$true] %s41
      %47 = dma.hbm_to_vmem [thread:$0]  %s40, 256, %s42, [#allocation6], 128, 128, 8
    $region9: #{tpu_custom_call.1} parent=1 // pred_fallthru
      _
    // Predicated region
    $region10: #{tpu_custom_call.1} parent=1 // pred_check
      _
    $region11: #{tpu_custom_call.1} parent=1 // pred_check_branch
      %49 = sbr.rel (0) target = $region13
    $region12: #{tpu_custom_call.1} parent=1 // pred_region
      %51 = dma.done [#allocation3], 256
    $region13: #{tpu_custom_call.1} parent=1 // pred_fallthru
      _
    // Predicated region
    $region14: #{tpu_custom_call.1} parent=1 // pred_check
      _
    $region15: #{tpu_custom_call.1} parent=1 // pred_check_branch
      %53 = sbr.rel (0) target = $region17
    $region16: #{tpu_custom_call.1} parent=1 // pred_region
      %55 = dma.done [#allocation6], 256
    $region17: #{tpu_custom_call.1} parent=1 // pred_fallthru
      _
    %s56 = sadd.s32 0, 0
    %p57 = scmp.lt.s32.totalorder %s56, 0
    %s58 = scalar_select %p57, %s56, 0
    %s59 = smul.u32 2, %s58
    %s60 = sadd.s32 0, 0
    %p61 = scmp.lt.s32.totalorder %s60, 0
    %s62 = scalar_select %p61, %s60, 0
    %s63 = smul.u32 2, %s62
    %p64 = scmp.eq.s32.totalorder 0, 0
    // Predicated region
    $region18: #{tpu_custom_call.1} parent=1 // pred_check
      %p65 = pneg %p64
    $region19: #{tpu_custom_call.1} parent=1 // pred_check_branch
      %67 = sbr.rel (%p65) target = $region21
    $region20: #{tpu_custom_call.1} parent=1 // pred_region
      %68 = vst [vmem:[#allocation7] sm:$0xff] 0.0
    $region21: #{tpu_custom_call.1} parent=1 // pred_fallthru
      _
    %v69 = vld [vmem:[#allocation2] sm:$0xff]
    %v70 = vld [vmem:[#allocation2 + $0x8] sm:$0xff]
    %v71 = vld [vmem:[#allocation5] sm:$0xff]
    %v72 = vld [vmem:[#allocation5 + $0x8] sm:$0xff]
    %v73 = vsub.f32 %v69, %v71
    %v74 = vsub.f32 %v70, %v72
    %v75 = vmul.f32 %v73, %v73
    %v76 = vmul.f32 %v74, %v74
    %v77 = vld [vmem:[#allocation7] sm:$0xff]
    %v78 = vadd.f32 %v75, %v76
    %v79 = vadd.f32 %v77, %v78
    %80 = vst [vmem:[#allocation7] sm:$0xff] %v79
    // Predicated region
    $region22: #{tpu_custom_call.1} parent=1 // pred_check
      _
    $region23: #{tpu_custom_call.1} parent=1 // pred_check_branch
      %82 = sbr.rel (0) target = $region25
    $region24: #{tpu_custom_call.1} parent=1 // pred_region
      %84 = vsyncadd [#allocation4], 0
      %s86 = sshll.u32 [#allocation7], 4
      %s87 = int_to_ptr.vmem [resolvable:$true] %s86
      %s88 = sshll.u32 %s2, 4
      %s89 = int_to_ptr.hbm [resolvable:$true] %s88
      %91 = dma.vmem_to_hbm [thread:$0]  %s87, 128, %s89, [#allocation4]
    $region25: #{tpu_custom_call.1} parent=1 // pred_fallthru
      _
    // Predicated region
    $region26: #{tpu_custom_call.1} parent=1 // pred_check
      _
    $region27: #{tpu_custom_call.1} parent=1 // pred_check_branch
      %93 = sbr.rel (0) target = $region29
    $region28: #{tpu_custom_call.1} parent=1 // pred_region
      %95 = dma.done [#allocation4], 128
    $region29: #{tpu_custom_call.1} parent=1 // pred_fallthru
      _
    %96 = vsyncpa [#allocation3], 1
    %97 = vsyncpa [#allocation6], 1
    %98 = vsyncpa [#allocation4], 1

</llo_original>
